<compile_context>
chip_gen: v5e
topology: v5e:2x2
jax: 0.10.0
libtpu: 0.0.40
codegen_flags: <defaults>
</compile_context>

<pallas_src>
import functools
import math

import jax
import jax.numpy as jnp
from jax.experimental import pallas as pl
from jax.experimental.pallas import tpu as pltpu


def _softplus_kernel(b_ref, o_ref, *, eps):
    # Compute in f32 regardless of parameter dtype so that `+ eps` survives
    # (eps=1e-5 is below bf16 ulp near 0.1); cast only on the final store.
    b = b_ref[...].astype(jnp.float32)
    # Numerically stable softplus: max(x, 0) + log1p(exp(-|x|))
    sp = jnp.maximum(b, 0.0) + jnp.log1p(jnp.exp(-jnp.abs(b)))
    o_ref[...] = (sp + eps).astype(o_ref.dtype)


def variance_encoder_forward(x, b, eps=1e-5):
    """Pallas implementation of VarianceEncoder.forward.

    x: activation tensor in NCHW, e.g. (N, C, H, W). It is ignored by the
       forward pass (matches the PyTorch module).
    b: parameter of shape (1, C, 1, 1).
    Returns: softplus(b) + eps, shape (1, C, 1, 1), dtype of b.
    """
    del x  # forward ignores x, exactly like the PyTorch module
    c = b.shape[1]

    # Lane-dense packing for large C; tiny C stays as a single (1, C) row.
    if c >= 1024 and c % 128 == 0:
        b2d = b.reshape(c // 128, 128)
    else:
        b2d = b.reshape(1, c)

    out2d = pl.pallas_call(
        functools.partial(_softplus_kernel, eps=eps),
        out_shape=jax.ShapeDtypeStruct(b2d.shape, b.dtype),
        # No grid: pure VMEM-resident codegen — one DMA in, one DMA out.
        in_specs=[pl.BlockSpec(memory_space=pltpu.MemorySpace.VMEM)],
        out_specs=pl.BlockSpec(memory_space=pltpu.MemorySpace.VMEM),
    )(b2d)

    return out2d.reshape(1, c, 1, 1)


def make_variance_encoder_param(shape, init=0.1, eps=1e-5, dtype=jnp.float32):
    """Deterministic parameter init, identical to the PyTorch __init__."""
    # init = log(exp(init - eps) - 1)
    init_val = math.log(math.exp(init - eps) - 1.0)
    assert len(shape) == 4, "channelwise=True with 4-D shape"
    b_shape = (1, shape[1], 1, 1)
    return jnp.full(b_shape, init_val, dtype=dtype)


if __name__ == "__main__":
    # Small shapes consistent with the module: feature map (N, C, H, W).
    shape = (2, 4, 16, 16)
    eps = 1e-5

    key = jax.random.PRNGKey(0)
    x = jax.random.normal(key, shape, dtype=jnp.float32)  # NCHW, ignored by fwd
    b = make_variance_encoder_param(shape, init=0.1, eps=eps)

    out = variance_encoder_forward(x, b, eps=eps)
    out = jax.block_until_ready(out)

    # Reference check in plain JAX: softplus(b) + eps  (should be ~init=0.1)
    ref = jax.nn.softplus(b) + eps
    assert out.shape == (1, shape[1], 1, 1), out.shape
    assert out.dtype == b.dtype, out.dtype
    assert jnp.allclose(out, ref, atol=1e-6, rtol=1e-6), (out, ref)

    print("KERNEL_OK")
</pallas_src>

<mosaic_0001>
module attributes {stable_mosaic.version = 11 : i64} {
  func.func @_softplus_kernel(%arg0: memref<1x4xf32, #tpu.memory_space<vmem>>, %arg1: memref<1x4xf32, #tpu.memory_space<vmem>>) attributes {dimension_semantics = [], scalar_prefetch = 0 : i64, scratch_operands = 0 : i64, tpu.core_type = #tpu.core_type<tc>} {
    %c0 = arith.constant 0 : index
    %c0_0 = arith.constant 0 : index
    %0 = vector.load %arg0[%c0, %c0_0] : memref<1x4xf32, #tpu.memory_space<vmem>>, vector<1x4xf32>
    %cst = arith.constant 0.000000e+00 : f32
    %1 = vector.broadcast %cst : f32 to vector<1x4xf32>
    %2 = arith.maximumf %0, %1 : vector<1x4xf32>
    %3 = math.absf %0 : vector<1x4xf32>
    %cst_1 = arith.constant 0.000000e+00 : f32
    %4 = vector.broadcast %cst_1 : f32 to vector<1x4xf32>
    %5 = arith.subf %4, %3 : vector<1x4xf32>
    %6 = math.exp %5 : vector<1x4xf32>
    %7 = math.log1p %6 : vector<1x4xf32>
    %8 = arith.addf %2, %7 : vector<1x4xf32>
    %cst_2 = arith.constant 9.99999974E-6 : f32
    %9 = vector.broadcast %cst_2 : f32 to vector<1x4xf32>
    %10 = arith.addf %8, %9 : vector<1x4xf32>
    %c0_3 = arith.constant 0 : index
    %c0_4 = arith.constant 0 : index
    %11 = vector.load %arg1[%c0_3, %c0_4] : memref<1x4xf32, #tpu.memory_space<vmem>>, vector<1x4xf32>
    tpu.vector_store %arg1[%c0_3, %c0_4], %10 {strides = array<i32>} : memref<1x4xf32, #tpu.memory_space<vmem>>, vector<1x4xf32>,
    return
  }
}

</mosaic_0001>

<llo_original>
// kernel: tpu_custom_call.1
$region0: #{tpu_custom_call.1}
  #allocation0 [shape = 'u32[]', space=smem, size = 0x4, offset = 0x4, fixed_abs, tag = 'smem constant byte address 0x4 - core index']
  #allocation1 [shape = 'u32[72,128]{1,0:T(1,128)}', space=vmem, size = 0x9000, scoped, tag = 'internal scratch']
  %s0 = inlined_call_operand.hbm [shape: f32[1,4], index: 0, kind: input, shape index: {}]
  %s1 = inlined_call_operand.hbm [shape: f32[1,4], index: 1, kind: output, shape index: {}]
  %s2 = sld [smem:[#allocation0]]
  $region18: #{tpu_custom_call.1} parent=0
    _
  %s4 = ssub.s32 1, %s2
  %s5 = scalar_select 0, %s4, %s2
  $region1: #{tpu_custom_call.1} parent=0
    #allocation2 [shape = 'u8[512]{0}', space=vmem, size = 0x400, scoped, tag = 'input window, operand 0, single buffered']
    #allocation3 [shape = 's32[1]{0}', space=sflag, size = 0x4, scoped, tag = 'scoped memory for tpu_custom_call.1']
    #allocation4 [shape = 's32[1]{0}', space=sflag, size = 0x4, scoped, tag = 'scoped memory for tpu_custom_call.1']
    #allocation5 [shape = 'u8[512]{0}', space=vmem, size = 0x400, scoped, tag = 'output window, operand 0, single buffered']
    %6 = vsyncpa [#allocation3], 0
    %7 = vsyncpa [#allocation4], 0
    // Predicated region
    $region2: #{tpu_custom_call.1} parent=1 // pred_check
      _
    $region3: #{tpu_custom_call.1} parent=1 // pred_check_branch
      %9 = sbr.rel (0) target = $region5
    $region4: #{tpu_custom_call.1} parent=1 // pred_region
      %11 = vsyncadd [#allocation3], 0
      %s13 = sshll.u32 %s0, 4
      %s14 = int_to_ptr.hbm [resolvable:$true] %s13
      %s15 = sshll.u32 [#allocation2], 4
      %s16 = int_to_ptr.vmem [resolvable:$true] %s15
      %18 = dma.hbm_to_vmem [thread:$0]  %s14, 16, %s16, [#allocation3]
    $region5: #{tpu_custom_call.1} parent=1 // pred_fallthru
      _
    // Predicated region
    $region6: #{tpu_custom_call.1} parent=1 // pred_check
      _
    $region7: #{tpu_custom_call.1} parent=1 // pred_check_branch
      %20 = sbr.rel (0) target = $region9
    $region8: #{tpu_custom_call.1} parent=1 // pred_region
      %22 = dma.done [#allocation3], 16
    $region9: #{tpu_custom_call.1} parent=1 // pred_fallthru
      _
    %v23 = vld [vmem:[#allocation2] sm:$0x1]
    %v24 = vmax.f32 %v23, 0.0
    %v25 = vand.u32 2147483647, %v23
    %v26 = vsub.f32 0.0, %v25
    %v27 = vmul.f32 %v26, 1.442695
    %v28 = vpow.pop %v27
    %v29 = vadd.f32 %v28, 1.0
    %v30 = vlog2.pop %v29
    %v31 = vmul.f32 %v30, 0.6931472
    %v32 = vmul.f32 -0.5, %v28
    %v33 = vadd.f32 %v32, 1.0
    %v34 = vmul.f32 %v33, %v28
    %v35 = vand.u32 2147483647, %v28
    %vm36 = vcmp.lt.f32.partialorder %v35, 0.0004427343
    %v37 = vsel %vm36, %v34, %v31
    %v38 = vadd.f32 %v24, %v37
    %v39 = vadd.f32 %v38, 1e-05
    %vm40 = vcmask 24576
    %41 = vst.msk [vmem:[#allocation5] sm:$0x1] %vm40, %v39
    // Predicated region
    $region10: #{tpu_custom_call.1} parent=1 // pred_check
      _
    $region11: #{tpu_custom_call.1} parent=1 // pred_check_branch
      %43 = sbr.rel (0) target = $region13
    $region12: #{tpu_custom_call.1} parent=1 // pred_region
      %45 = vsyncadd [#allocation4], 0
      %s47 = sshll.u32 [#allocation5], 4
      %s48 = int_to_ptr.vmem [resolvable:$true] %s47
      %s49 = sshll.u32 %s1, 4
      %s50 = int_to_ptr.hbm [resolvable:$true] %s49
      %52 = dma.vmem_to_hbm [thread:$0]  %s48, 16, %s50, [#allocation4]
    $region13: #{tpu_custom_call.1} parent=1 // pred_fallthru
      _
    // Predicated region
    $region14: #{tpu_custom_call.1} parent=1 // pred_check
      _
    $region15: #{tpu_custom_call.1} parent=1 // pred_check_branch
      %54 = sbr.rel (0) target = $region17
    $region16: #{tpu_custom_call.1} parent=1 // pred_region
      %56 = dma.done [#allocation4], 16
    $region17: #{tpu_custom_call.1} parent=1 // pred_fallthru
      _
    %57 = vsyncpa [#allocation3], 1
    %58 = vsyncpa [#allocation4], 1

</llo_original>
